<compile_context>
chip_gen: v7x
topology: tpu7x:2x2x1
jax: 0.10.0
libtpu: 0.0.40
codegen_flags: <defaults>
</compile_context>

<pallas_src>
import functools

import jax
import jax.numpy as jnp
from jax import lax
from jax.experimental import pallas as pl
from jax.experimental.pallas import tpu as pltpu

_EPS = 1e-5
_TARGET_BLOCK_BYTES = 2 * 1024 * 1024   # ~2 MiB blocks: HBM roofline sweet spot
_MIN_GRID_STEPS = 4                     # keep pipeline + megacore busy


def _round_up(a, b):
    return (a + b - 1) // b * b


def _round_down(a, b):
    return a // b * b


def _vmem_budgets():
    """Generation-aware (vmem_limit_bytes, fused_path_budget_bytes)."""
    try:
        cap = getattr(pltpu.get_tpu_info(), "vmem_capacity_bytes", None)
    except Exception:
        cap = None
    if cap is not None and cap >= (100 << 20):
        # v5e / v6e: 128 MiB physical VMEM -> keep mid-size L on the fused
        # (2-HBM-pass) path instead of the 3-pass fallback.
        return 96 << 20, 72 << 20
    # v7x (64 MiB per TensorCore) or unknown: stay conservative.
    return 44 << 20, 34 << 20


def _sublane(itemsize):
    return 16 if itemsize <= 2 else 8


def _pick_rows_fused(R, L, itemsize, budget):
    """Rows per fused-path block: multiple of the sublane pack (or R itself)."""
    sub = _sublane(itemsize)
    if R <= sub:
        return R                                # full-extent first dim is legal
    per_row = 4 * L * itemsize                  # dbl-buffered in + out blocks
    rows_budget = _round_down(budget // per_row, sub)
    rows_target = _round_up(max(1, _TARGET_BLOCK_BYTES // max(1, L * itemsize)), sub)
    rows = max(sub, min(rows_budget, rows_target))
    # Keep >= _MIN_GRID_STEPS grid steps when R allows it.
    if R > _MIN_GRID_STEPS * sub:
        rows = min(rows, max(sub, _round_down(R // _MIN_GRID_STEPS, sub)))
    else:
        rows = sub
    return rows


# ---------------------------------------------------------------------------
# Path A: fused single pass (whole row volume per block).
# ---------------------------------------------------------------------------
def _gnorm_fused_kernel(x_ref, o_ref, *, inv_n):
    # Pass 1: mean.  The widened f32 values feed straight into the reduce; no
    # full-size f32 copy of the block is kept live across phases.
    mean = jnp.sum(x_ref[...].astype(jnp.float32), axis=-1, keepdims=True) * inv_n
    # Pass 2: centered (numerically stable), biased variance.
    d = x_ref[...].astype(jnp.float32) - mean
    var = jnp.sum(d * d, axis=-1, keepdims=True) * inv_n
    scale = lax.rsqrt(var + _EPS)
    bias = -mean * scale
    # Pass 3: normalize; re-read x_ref so the reduction temporaries are dead.
    o_ref[...] = (x_ref[...].astype(jnp.float32) * scale + bias).astype(o_ref.dtype)


# ---------------------------------------------------------------------------
# Path B: large L -> tile L; pass 1 accumulates stats, pass 2 normalizes.
# ---------------------------------------------------------------------------
def _stats_kernel(x_ref, sum_ref, sumsq_ref, *, lt, true_l):
    l = pl.program_id(1)

    @pl.when(l == 0)
    def _init():
        sum_ref[...] = jnp.zeros_like(sum_ref)
        sumsq_ref[...] = jnp.zeros_like(sumsq_ref)

    x = x_ref[...].astype(jnp.float32)
    if true_l % lt != 0:
        # Partial last L block (no wrapper-side padding): zero out columns
        # past the true length so tail garbage never reaches the accumulators.
        col = l * lt + lax.broadcasted_iota(jnp.int32, x.shape, 1)
        x = jnp.where(col < true_l, x, 0.0)
    sum_ref[...] += jnp.sum(x, axis=-1, keepdims=True)
    sumsq_ref[...] += jnp.sum(x * x, axis=-1, keepdims=True)


def _apply_kernel(sum_ref, sumsq_ref, x_ref, o_ref, *, inv_n):
    mean = sum_ref[...] * inv_n
    # NOTE: E[x^2] - mean^2 (single extra HBM pass avoided); clamped at 0.
    # Less robust than the centered form when |mean| >> std, acceptable for
    # normalized-activation regimes.
    var = jnp.maximum(sumsq_ref[...] * inv_n - mean * mean, 0.0)
    scale = lax.rsqrt(var + _EPS)
    bias = -mean * scale
    o_ref[...] = (x_ref[...].astype(jnp.float32) * scale + bias).astype(o_ref.dtype)


# ---------------------------------------------------------------------------
# Wrapper
# ---------------------------------------------------------------------------
def gnorm(x, group_size, *, force_two_pass=False, l_tile=None):
    """GNorm forward.  x: (B, C, H, W), C % group_size == 0."""
    B, C, H, W = x.shape
    assert C % group_size == 0
    G = C // group_size
    L = group_size * H * W
    R = B * G
    itemsize = jnp.dtype(x.dtype).itemsize
    inv_n = 1.0 / float(L)

    vmem_limit, fused_budget = _vmem_budgets()
    sub = _sublane(itemsize)

    x2 = x.reshape(R, L)                        # contiguous reshape: no copy

    fused_fits = min(R, sub) * 4 * L * itemsize <= fused_budget

    if fused_fits and not force_two_pass:
        rows = _pick_rows_fused(R, L, itemsize, fused_budget)
        out2 = pl.pallas_call(
            functools.partial(_gnorm_fused_kernel, inv_n=inv_n),
            out_shape=jax.ShapeDtypeStruct((R, L), x.dtype),
            grid_spec=pltpu.PrefetchScalarGridSpec(
                num_scalar_prefetch=0,
                grid=(pl.cdiv(R, rows),),
                in_specs=[pl.BlockSpec((rows, L), lambda r: (r, 0))],
                out_specs=pl.BlockSpec((rows, L), lambda r: (r, 0)),
            ),
            compiler_params=pltpu.CompilerParams(
                dimension_semantics=("parallel",),
                vmem_limit_bytes=vmem_limit),
            cost_estimate=pl.CostEstimate(
                flops=int(8 * R * L),
                transcendentals=int(R),
                bytes_accessed=int(2 * R * L * itemsize)),
        )(x2)
        return out2.reshape(B, C, H, W)

    # ---- large-L fallback: tile L, accumulate stats then normalize. -------
    rows = R if R <= sub else sub
    if l_tile is None:
        lt = _round_up(max(128, _TARGET_BLOCK_BYTES // max(1, rows * itemsize)), 128)
    else:
        lt = _round_up(max(128, int(l_tile)), 128)
    lt = min(lt, _round_up(L, 128))
    # Never let the double-buffered (rows, lt) working set blow the budget.
    lt = min(lt, max(128, _round_down(fused_budget // (4 * rows * itemsize), 128)))

    grid = (pl.cdiv(R, rows), pl.cdiv(L, lt))

    sums, sumsqs = pl.pallas_call(
        functools.partial(_stats_kernel, lt=lt, true_l=L),
        out_shape=(jax.ShapeDtypeStruct((R, 1), jnp.float32),
                   jax.ShapeDtypeStruct((R, 1), jnp.float32)),
        grid_spec=pltpu.PrefetchScalarGridSpec(
            num_scalar_prefetch=0,
            grid=grid,
            in_specs=[pl.BlockSpec((rows, lt), lambda r, l: (r, l))],
            out_specs=(pl.BlockSpec((rows, 1), lambda r, l: (r, 0)),
                       pl.BlockSpec((rows, 1), lambda r, l: (r, 0))),
        ),
        compiler_params=pltpu.CompilerParams(
            dimension_semantics=("parallel", "arbitrary"),
            vmem_limit_bytes=vmem_limit),
        cost_estimate=pl.CostEstimate(
            flops=int(3 * R * L),
            transcendentals=0,
            bytes_accessed=int(R * L * itemsize + 8 * R)),
    )(x2)

    out2 = pl.pallas_call(
        functools.partial(_apply_kernel, inv_n=inv_n),
        out_shape=jax.ShapeDtypeStruct((R, L), x.dtype),
        grid_spec=pltpu.PrefetchScalarGridSpec(
            num_scalar_prefetch=0,
            grid=grid,
            in_specs=[pl.BlockSpec((rows, 1), lambda r, l: (r, 0)),
                      pl.BlockSpec((rows, 1), lambda r, l: (r, 0)),
                      pl.BlockSpec((rows, lt), lambda r, l: (r, l))],
            out_specs=pl.BlockSpec((rows, lt), lambda r, l: (r, l)),
        ),
        compiler_params=pltpu.CompilerParams(
            dimension_semantics=("parallel", "parallel"),
            vmem_limit_bytes=vmem_limit),
        cost_estimate=pl.CostEstimate(
            flops=int(2 * R * L),
            transcendentals=int(R),
            bytes_accessed=int(2 * R * L * itemsize + 8 * R)),
    )(sums, sumsqs, x2)

    return out2.reshape(B, C, H, W)


# ---------------------------------------------------------------------------
# Pure-JAX reference mirroring the PyTorch forward.
# ---------------------------------------------------------------------------
def gnorm_ref(x, group_size):
    B, C, H, W = x.shape
    G = C // group_size
    xv = x.reshape(B, G, group_size, H, W).astype(jnp.float32)
    mean = jnp.mean(xv, axis=(2, 3, 4), keepdims=True)
    var = jnp.mean((xv - mean) ** 2, axis=(2, 3, 4), keepdims=True)
    y = (xv - mean) / jnp.sqrt(var + _EPS)
    return y.reshape(B, C, H, W).astype(x.dtype)


if __name__ == "__main__":
    key = jax.random.PRNGKey(0)

    # Main case: fused single-pass path.
    B, C, H, W = 2, 4, 16, 16
    group_size = 2
    x = jax.random.normal(key, (B, C, H, W), dtype=jnp.float32)

    out = jax.block_until_ready(gnorm(x, group_size))
    ref = gnorm_ref(x, group_size)
    assert out.shape == (B, C, H, W)
    assert jnp.allclose(out, ref, atol=2e-5, rtol=2e-5), (
        float(jnp.max(jnp.abs(out - ref))))

    # Partial last row-block (R = 9 with 8-row blocks): no wrapper padding,
    # tail rows handled by Pallas masked writes.
    k1 = jax.random.PRNGKey(1)
    xb = jax.random.normal(k1, (3, 6, 16, 16), dtype=jnp.float32)
    outb = jax.block_until_ready(gnorm(xb, 2))
    refb = gnorm_ref(xb, 2)
    assert jnp.allclose(outb, refb, atol=2e-5, rtol=2e-5), (
        float(jnp.max(jnp.abs(outb - refb))))

    # Fused path with L not a multiple of 128 (block last dim == full dim).
    k2 = jax.random.PRNGKey(2)
    xc = jax.random.normal(k2, (2, 4, 10, 10), dtype=jnp.float32)
    outc = jax.block_until_ready(gnorm(xc, 2))
    refc = gnorm_ref(xc, 2)
    assert jnp.allclose(outc, refc, atol=2e-5, rtol=2e-5), (
        float(jnp.max(jnp.abs(outc - refc))))

    # Large-L fallback (forced): multi-step L accumulation.
    outd = jax.block_until_ready(
        gnorm(x, group_size, force_two_pass=True, l_tile=128))
    assert jnp.allclose(outd, ref, atol=5e-5, rtol=5e-5), (
        float(jnp.max(jnp.abs(outd - ref))))

    # Large-L fallback with L not a multiple of the tile: in-kernel tail mask.
    k3 = jax.random.PRNGKey(3)
    xe = jax.random.normal(k3, (2, 6, 10, 10), dtype=jnp.float32)
    oute = jax.block_until_ready(gnorm(xe, 3, force_two_pass=True, l_tile=128))
    refe = gnorm_ref(xe, 3)
    assert jnp.allclose(oute, refe, atol=5e-5, rtol=5e-5), (
        float(jnp.max(jnp.abs(oute - refe))))

    print("KERNEL_OK")
</pallas_src>

<mosaic_0001>
module attributes {stable_mosaic.version = 11 : i64} {
  func.func @_gnorm_fused_kernel(%arg0: i32, %arg1: memref<4x512xf32, #tpu.memory_space<vmem>>, %arg2: memref<4x512xf32, #tpu.memory_space<vmem>>) attributes {dimension_semantics = [#tpu.dimension_semantics<parallel>], iteration_bounds = array<i64: 1>, scalar_prefetch = 0 : i64, scratch_operands = 0 : i64, tpu.core_type = #tpu.core_type<tc>, window_params = [{transform_indices = @transform_0, window_bounds = array<i64: 4, 512>}, {transform_indices = @transform_1, window_bounds = array<i64: 4, 512>}]} {
    %c0 = arith.constant 0 : index
    %c0_0 = arith.constant 0 : index
    %0 = vector.load %arg1[%c0, %c0_0] : memref<4x512xf32, #tpu.memory_space<vmem>>, vector<4x512xf32>
    %cst = arith.constant dense<0.000000e+00> : vector<4xf32>
    %1 = vector.multi_reduction <add>, %0, %cst [1] : vector<4x512xf32> to vector<4xf32>
    %2 = vector.shape_cast %1 : vector<4xf32> to vector<4x1xf32>
    %cst_1 = arith.constant 0.001953125 : f32
    %3 = vector.broadcast %cst_1 : f32 to vector<4x1xf32>
    %4 = arith.mulf %2, %3 : vector<4x1xf32>
    %c0_2 = arith.constant 0 : index
    %c0_3 = arith.constant 0 : index
    %5 = vector.load %arg1[%c0_2, %c0_3] : memref<4x512xf32, #tpu.memory_space<vmem>>, vector<4x512xf32>
    %6 = vector.broadcast %4 : vector<4x1xf32> to vector<4x512xf32>
    %7 = arith.subf %5, %6 : vector<4x512xf32>
    %8 = arith.mulf %7, %7 : vector<4x512xf32>
    %cst_4 = arith.constant dense<0.000000e+00> : vector<4xf32>
    %9 = vector.multi_reduction <add>, %8, %cst_4 [1] : vector<4x512xf32> to vector<4xf32>
    %10 = vector.shape_cast %9 : vector<4xf32> to vector<4x1xf32>
    %cst_5 = arith.constant 0.001953125 : f32
    %11 = vector.broadcast %cst_5 : f32 to vector<4x1xf32>
    %12 = arith.mulf %10, %11 : vector<4x1xf32>
    %cst_6 = arith.constant 9.99999974E-6 : f32
    %13 = vector.broadcast %cst_6 : f32 to vector<4x1xf32>
    %14 = arith.addf %12, %13 : vector<4x1xf32>
    %15 = math.rsqrt %14 : vector<4x1xf32>
    %cst_7 = arith.constant 0.000000e+00 : f32
    %16 = vector.broadcast %cst_7 : f32 to vector<4x1xf32>
    %17 = arith.subf %16, %4 : vector<4x1xf32>
    %18 = arith.mulf %17, %15 : vector<4x1xf32>
    %c0_8 = arith.constant 0 : index
    %c0_9 = arith.constant 0 : index
    %19 = vector.load %arg1[%c0_8, %c0_9] : memref<4x512xf32, #tpu.memory_space<vmem>>, vector<4x512xf32>
    %20 = vector.broadcast %15 : vector<4x1xf32> to vector<4x512xf32>
    %21 = arith.mulf %19, %20 : vector<4x512xf32>
    %22 = vector.broadcast %18 : vector<4x1xf32> to vector<4x512xf32>
    %23 = arith.addf %21, %22 : vector<4x512xf32>
    %c0_10 = arith.constant 0 : index
    %c0_11 = arith.constant 0 : index
    %24 = vector.load %arg2[%c0_10, %c0_11] : memref<4x512xf32, #tpu.memory_space<vmem>>, vector<4x512xf32>
    tpu.vector_store %arg2[%c0_10, %c0_11], %23 {strides = array<i32>} : memref<4x512xf32, #tpu.memory_space<vmem>>, vector<4x512xf32>,
    return
  }
  func.func @transform_0(%arg0: i32) -> (i32, i32) {
    %c0_i32 = arith.constant 0 : i32
    %c0_i32_0 = arith.constant 0 : i32
    return %arg0, %c0_i32 : i32, i32
  }
  func.func @transform_1(%arg0: i32) -> (i32, i32) {
    %c0_i32 = arith.constant 0 : i32
    %c0_i32_0 = arith.constant 0 : i32
    return %arg0, %c0_i32 : i32, i32
  }
}

</mosaic_0001>

<llo_original>
// kernel: tpu_custom_call.1
$region0: #{tpu_custom_call.1}
  #allocation0 [shape = 'u32[]', space=smem, size = 0x4, offset = 0x4, fixed_abs, tag = 'smem constant byte address 0x4 - core index']
  #allocation1 [shape = 'u32[144,128]{1,0:T(1,128)}', space=vmem, size = 0x12000, scoped, tag = 'internal scratch']
  %s0 = inlined_call_operand.hbm [shape: f32[4,512], index: 0, kind: input, shape index: {}]
  %s1 = inlined_call_operand.hbm [shape: f32[4,512], index: 1, kind: output, shape index: {}]
  %s2 = sld [smem:[#allocation0]]
  $region18: #{tpu_custom_call.1} parent=0
    _
  %s4 = ssub.s32 1, %s2
  %s5 = scalar_select 0, %s4, %s2
  $region1: #{tpu_custom_call.1} parent=0
    #allocation2 [shape = 'u8[8192]{0}', space=vmem, size = 0x2000, scoped, tag = 'input window, operand 0, single buffered']
    #allocation3 [shape = 's32[1]{0}', space=sflag, size = 0x4, scoped, tag = 'scoped memory for tpu_custom_call.1']
    #allocation4 [shape = 's32[1]{0}', space=sflag, size = 0x4, scoped, tag = 'scoped memory for tpu_custom_call.1']
    #allocation5 [shape = 'u8[8192]{0}', space=vmem, size = 0x2000, scoped, tag = 'output window, operand 0, single buffered']
    %6 = vsyncpa [#allocation3], 0
    %7 = vsyncpa [#allocation4], 0
    // Predicated region
    $region2: #{tpu_custom_call.1} parent=1 // pred_check
      _
    $region3: #{tpu_custom_call.1} parent=1 // pred_check_branch
      %9 = sbr.rel (0) target = $region5
    $region4: #{tpu_custom_call.1} parent=1 // pred_region
      %s11 = ssub.s32 256, 256
      %12 = vsyncadd [#allocation3], %s11
      %s14 = sshll.u32 [#allocation2], 4
      %s15 = int_to_ptr.vmem [resolvable:$true] %s14
      %17 = dma.hbm_to_vmem [thread:$0]  %s0, 256, %s15, [#allocation3]
    $region5: #{tpu_custom_call.1} parent=1 // pred_fallthru
      _
    // Predicated region
    $region6: #{tpu_custom_call.1} parent=1 // pred_check
      _
    $region7: #{tpu_custom_call.1} parent=1 // pred_check_branch
      %19 = sbr.rel (0) target = $region9
    $region8: #{tpu_custom_call.1} parent=1 // pred_region
      %20 = dma.done [#allocation3], 256
    $region9: #{tpu_custom_call.1} parent=1 // pred_fallthru
      _
    %v21 = vld [vmem:[#allocation2] sm:$0xff]
    %v22 = vld [vmem:[#allocation2 + $0x8] sm:$0xff]
    %v25 = vcombine.high %v21, %v21
    %v26 = vcombine.high %v22, %v22
    %vm29 = vcmask 1043456
    %v30 = vsel %vm29, %v21, 0.0
    %v31 = vsel %vm29, %v25, 0.0
    %v32 = vadd.f32 %v30, %v31
    %v33 = vsel %vm29, %v22, 0.0
    %v34 = vadd.f32 %v32, %v33
    %v35 = vsel %vm29, %v26, 0.0
    %v36 = vadd.f32 %v34, %v35
    %37 = vadd.xlane.f32.xlu0 %v36
    %v38 = vpop.xlane.xlu0 %37
    %v39 = vmul.f32 %v38, 0.001953125
    %v42 = vunpack.c.l.s4 839922192
    %v43 = vunpack.c.0.s8 %v42
    %v44 = vlaneseq
    %v45 = vshrl.u32 %v44, 7
    %v46 = vsub.s32 %v43, %v45
    %v47 = vrot.slane %v39, %v46
    %v49 = vsub.f32 %v21, %v47
    %v50 = vsub.f32 %v22, %v47
    %v51 = vmul.f32 %v49, %v49
    %v52 = vmul.f32 %v50, %v50
    %v55 = vcombine.high %v51, %v51
    %v56 = vcombine.high %v52, %v52
    %v59 = vsel %vm29, %v51, 0.0
    %v60 = vsel %vm29, %v55, 0.0
    %v61 = vadd.f32 %v59, %v60
    %v62 = vsel %vm29, %v52, 0.0
    %v63 = vadd.f32 %v61, %v62
    %v64 = vsel %vm29, %v56, 0.0
    %v65 = vadd.f32 %v63, %v64
    %66 = vadd.xlane.f32.xlu0 %v65
    %v67 = vpop.xlane.xlu0 %66
    %v68 = vmul.f32 %v67, 0.001953125
    %v69 = vadd.f32 %v68, 1e-05
    %v70 = vrsqrt.pop %v69
    %v71 = vsub.f32 0.0, %v39
    %v72 = vmul.f32 %v71, %v70
    %v75 = vunpack.c.l.s4 839922192
    %v76 = vunpack.c.0.s8 %v75
    %v77 = vlaneseq
    %v78 = vshrl.u32 %v77, 7
    %v79 = vsub.s32 %v76, %v78
    %v80 = vrot.slane %v70, %v79
    %v82 = vmul.f32 %v21, %v80
    %v83 = vmul.f32 %v22, %v80
    %v86 = vunpack.c.l.s4 839922192
    %v87 = vunpack.c.0.s8 %v86
    %v88 = vlaneseq
    %v89 = vshrl.u32 %v88, 7
    %v90 = vsub.s32 %v87, %v89
    %v91 = vrot.slane %v72, %v90
    %v93 = vadd.f32 %v82, %v91
    %v94 = vadd.f32 %v83, %v91
    %95 = vst [vmem:[#allocation5] sm:$0xff] %v93
    %96 = vst [vmem:[#allocation5 + $0x8] sm:$0xff] %v94
    // Predicated region
    $region10: #{tpu_custom_call.1} parent=1 // pred_check
      _
    $region11: #{tpu_custom_call.1} parent=1 // pred_check_branch
      %98 = sbr.rel (0) target = $region13
    $region12: #{tpu_custom_call.1} parent=1 // pred_region
      %s100 = ssub.s32 256, 256
      %101 = vsyncadd [#allocation4], %s100
      %s103 = sshll.u32 [#allocation5], 4
      %s104 = int_to_ptr.vmem [resolvable:$true] %s103
      %106 = dma.vmem_to_hbm [thread:$0]  %s104, 256, %s1, [#allocation4]
    $region13: #{tpu_custom_call.1} parent=1 // pred_fallthru
      _
    // Predicated region
    $region14: #{tpu_custom_call.1} parent=1 // pred_check
      _
    $region15: #{tpu_custom_call.1} parent=1 // pred_check_branch
      %108 = sbr.rel (0) target = $region17
    $region16: #{tpu_custom_call.1} parent=1 // pred_region
      %109 = dma.done [#allocation4], 256
    $region17: #{tpu_custom_call.1} parent=1 // pred_fallthru
      _
    %110 = vsyncpa [#allocation3], 1
    %111 = vsyncpa [#allocation4], 1

</llo_original>
